<compile_context>
chip_gen: v6e
topology: v6e:2x2x1
jax: 0.10.0
libtpu: 0.0.40
codegen_flags: <defaults>
</compile_context>

<pallas_src>
import functools

import jax
import jax.numpy as jnp
from jax import lax
from jax.experimental import pallas as pl
from jax.experimental.pallas import tpu as pltpu


def _round_up(x, m):
    return ((x + m - 1) // m) * m


def _conv_bn_silu_kernel(x_ref, w_ref, shift_ref, out_ref, *, TH, KH, stride, Cout):
    """One batch element x one tile of TH output rows."""
    # x_ref:     (1, Hp2, Wo, KWC)     kw-packed zero-padded input, bf16
    # w_ref:     (KH*KWC, Cout_mxu)    bf16, BN-scale already folded in
    # shift_ref: (1, Cout)             f32 folded BN shift (+ conv bias)
    # out_ref:   (1, TH, Wo, Cout)     out_dtype (unpadded channels)
    Wo = x_ref.shape[2]
    KWC = x_ref.shape[3]

    h = pl.program_id(1)
    row0 = pl.multiple_of(h * (TH * stride), TH * stride)

    # ---- im2col over kh only (kw/cin were packed into lanes by the wrapper) --
    taps = []
    for kh in range(KH):                       # static unrolled (KH is small)
        if stride == 1:
            patch = x_ref[0, pl.ds(row0 + kh, TH), :, :]          # (TH, Wo, KWC)
        else:
            # Contiguous read + reshape + static slice instead of a strided ds.
            rows = x_ref[0, pl.ds(row0 + kh, TH * stride), :, :]  # (TH*s, Wo, KWC)
            patch = rows.reshape(TH, stride, Wo, KWC)[:, 0]       # (TH, Wo, KWC)
        taps.append(patch)
    patches = taps[0] if KH == 1 else jnp.concatenate(taps, axis=-1)
    patches = patches.reshape(TH * Wo, KH * KWC)                  # bf16

    # ---- single MXU matmul, f32 accumulation ---------------------------------
    acc = jnp.dot(patches, w_ref[...], preferred_element_type=jnp.float32)

    # ---- fused BN shift + SiLU epilogue (scale already in the weights) -------
    y = acc[:, :Cout] + shift_ref[0, :]
    # EUP-friendly SiLU: exp and the reciprocal both go to the EUP slot.
    y = y * pl.reciprocal(1.0 + jnp.exp(-y), approx=True)
    out_ref[...] = y.reshape(1, TH, Wo, Cout).astype(out_ref.dtype)


def _vmem_limit_bytes():
    """~3/4 of physical VMEM, capped at 100 MiB (v5e/v6e: 128 MiB, v7x: 64 MiB)."""
    cap = 64 * 1024 * 1024
    try:
        info = pltpu.get_tpu_info()
        cap = getattr(info, "vmem_capacity_bytes", cap) or cap
    except Exception:
        pass
    return int(min((cap * 3) // 4, 100 * 1024 * 1024))


def _pick_row_tile(Ho, Wo, per_row_bytes, fixed_bytes, budget_bytes, max_rows=8192):
    """Largest divisor TH of Ho whose per-step working set fits the VMEM budget."""
    best = 1
    for th in range(1, Ho + 1):
        if Ho % th:
            continue
        if th * Wo > max_rows:
            continue
        if fixed_bytes + th * per_row_bytes <= budget_bytes:
            best = th
    # TODO(synk): for prime/awkward Ho use a cdiv grid + tail guard instead of
    # letting TH collapse to 1 (tiny-M matmuls + per-grid-step overhead).
    return best


def conv_norm_act_nhwc(x_nhwc, weight, gamma, beta, running_mean, running_var, *,
                       stride=1, padding=0, groups=1, bias=None, eps=1e-5,
                       compute_dtype=jnp.bfloat16, out_dtype=jnp.float32):
    """ConvNormAct.forward (inference-mode BN), NHWC in / NHWC out.

    Keep networks NHWC end-to-end and call this directly to avoid layout passes.
    """
    assert groups == 1  # TODO(synk): grouped / depthwise conv not implemented
    N, H, W, Cin = x_nhwc.shape
    Cout, Cin_w, KH, KW = weight.shape
    assert Cin_w == Cin
    Ho = (H + 2 * padding - KH) // stride + 1
    Wo = (W + 2 * padding - KW) // stride + 1

    Cout_mxu = _round_up(Cout, 128)        # lane-dense MXU output columns
    KWC = KW * Cin
    KWC_pad = _round_up(KWC, 8)            # 8-lane-aligned kh-concat offsets

    # ---- kw-packed input: x_packed[n,h,wo, kw*Cin+c] = x_pad[n,h, wo*s+kw, c]
    # TODO(synk): for large Cin (>~32) skip this packing (it costs ~KW x input
    # HBM/VMEM) and do the per-tap im2col from the plain padded image instead.
    extra_h = max(0, (Ho * stride + KH - 1) - (H + 2 * padding))   # stride>1 slack rows
    xp = jnp.pad(x_nhwc.astype(compute_dtype),
                 ((0, 0), (padding, padding + extra_h), (padding, padding), (0, 0)))
    Hp2 = H + 2 * padding + extra_h
    cols = [xp[:, :, kw: kw + (Wo - 1) * stride + 1: stride, :] for kw in range(KW)]
    x_packed = jnp.concatenate(cols, axis=-1)                      # (N, Hp2, Wo, KW*Cin)
    if KWC_pad != KWC:
        x_packed = jnp.pad(x_packed, ((0, 0), (0, 0), (0, 0), (0, KWC_pad - KWC)))

    # ---- fold BN running stats: scale -> weights, shift stays separate -------
    scale = (gamma / jnp.sqrt(running_var + eps)).astype(jnp.float32)
    shift = (beta - running_mean * scale).astype(jnp.float32)
    if bias is not None:
        shift = shift + bias.astype(jnp.float32) * scale
    w = jnp.transpose(weight.astype(jnp.float32), (2, 3, 1, 0)) * scale  # (KH,KW,Cin,Cout)
    w = w.astype(compute_dtype).reshape(KH, KWC, Cout)
    w = jnp.pad(w, ((0, 0), (0, KWC_pad - KWC), (0, Cout_mxu - Cout)))
    w = w.reshape(KH * KWC_pad, Cout_mxu)
    shift = shift.reshape(1, Cout)

    # ---- generation-aware tiling / VMEM budget --------------------------------
    vmem_limit = _vmem_limit_bytes()
    ics = jnp.dtype(compute_dtype).itemsize
    ios = jnp.dtype(out_dtype).itemsize
    fixed = 2 * Hp2 * Wo * KWC_pad * ics            # double-buffered packed input block
    fixed += 2 * KH * KWC_pad * Cout_mxu * ics      # weight slab buffers
    per_row = Wo * KH * KWC_pad * ics               # im2col patches
    per_row += 2 * Wo * Cout_mxu * 4                # f32 acc + epilogue temp
    per_row += 2 * Wo * Cout * ios                  # double-buffered output block
    TH = _pick_row_tile(Ho, Wo, per_row, fixed, int(vmem_limit * 0.6))
    HT = Ho // TH

    # Shard the batch axis across TensorCores when possible so the per-image
    # input block (keyed only on n) is not DMA'd once per core.
    if N >= 2:
        dim_sem = ("parallel", "arbitrary")
    else:
        dim_sem = ("arbitrary", "parallel")

    kernel = functools.partial(_conv_bn_silu_kernel,
                               TH=TH, KH=KH, stride=stride, Cout=Cout)

    out = pl.pallas_call(
        kernel,
        out_shape=jax.ShapeDtypeStruct((N, Ho, Wo, Cout), out_dtype),
        grid_spec=pltpu.PrefetchScalarGridSpec(
            num_scalar_prefetch=0,
            grid=(N, HT),                           # batch x output-row tiles
            in_specs=[
                # Whole packed image per batch element (block index depends
                # only on n, so it stays resident across the h-tile axis).
                # TODO(synk): for large images switch to halo'd H tiles
                # (element-offset blocks) and mark constant-index operands
                # pl.Buffered(1) to respect v7x's 64 MiB VMEM.
                pl.BlockSpec((1, Hp2, Wo, KWC_pad), lambda n, h: (n, 0, 0, 0)),
                pl.BlockSpec((KH * KWC_pad, Cout_mxu), lambda n, h: (0, 0)),
                pl.BlockSpec((1, Cout), lambda n, h: (0, 0)),
            ],
            out_specs=pl.BlockSpec((1, TH, Wo, Cout), lambda n, h: (n, h, 0, 0)),
        ),
        compiler_params=pltpu.CompilerParams(
            dimension_semantics=dim_sem,
            vmem_limit_bytes=vmem_limit),
    )(x_packed, w, shift)
    return out


def conv_norm_act(x_nchw, weight, gamma, beta, running_mean, running_var, **kwargs):
    """NCHW adapter for PyTorch-parity testing (prefer the NHWC entry point)."""
    x = jnp.transpose(x_nchw, (0, 2, 3, 1))
    y = conv_norm_act_nhwc(x, weight, gamma, beta, running_mean, running_var, **kwargs)
    return jnp.transpose(y, (0, 3, 1, 2))


def _reference(x, weight, gamma, beta, running_mean, running_var, *,
               stride, padding, bias=None, eps=1e-5, compute_dtype=jnp.bfloat16):
    # Match kernel operand precision: BN scale folded into bf16 weights,
    # bf16 activations, f32 accumulation.
    scale = gamma / jnp.sqrt(running_var + eps)
    shift = beta - running_mean * scale
    if bias is not None:
        shift = shift + bias * scale
    wq = (weight * scale[:, None, None, None]).astype(compute_dtype).astype(jnp.float32)
    xq = x.astype(compute_dtype).astype(jnp.float32)
    y = lax.conv_general_dilated(
        xq, wq, window_strides=(stride, stride),
        padding=[(padding, padding), (padding, padding)],
        dimension_numbers=("NCHW", "OIHW", "NCHW"),
        precision=lax.Precision.HIGHEST)
    y = y + shift[None, :, None, None]
    return y * jax.nn.sigmoid(y)


if __name__ == "__main__":
    # ConvNormAct(in_channels=4, out_channels=8, kernel_size=3, stride=1,
    #             padding=1, groups=1, bias=False), eval-mode BN.
    N, Cin, H, W = 2, 4, 16, 16
    Cout, K, stride, padding = 8, 3, 1, 1

    key = jax.random.PRNGKey(0)
    kx, kw_, kg, kb, km, kv = jax.random.split(key, 6)

    x = jax.random.normal(kx, (N, Cin, H, W), dtype=jnp.float32)
    fan_in = Cin * K * K
    weight = jax.random.uniform(kw_, (Cout, Cin, K, K), dtype=jnp.float32,
                                minval=-1.0, maxval=1.0) / jnp.sqrt(fan_in)
    gamma = jax.random.uniform(kg, (Cout,), dtype=jnp.float32,
                               minval=0.5, maxval=1.5)
    beta = 0.1 * jax.random.normal(kb, (Cout,), dtype=jnp.float32)
    running_mean = 0.1 * jax.random.normal(km, (Cout,), dtype=jnp.float32)
    running_var = jax.random.uniform(kv, (Cout,), dtype=jnp.float32,
                                     minval=0.5, maxval=1.5)

    out = conv_norm_act(x, weight, gamma, beta, running_mean, running_var,
                        stride=stride, padding=padding, groups=1, bias=None)
    out = jax.block_until_ready(out)

    ref = _reference(x, weight, gamma, beta, running_mean, running_var,
                     stride=stride, padding=padding, bias=None)
    assert out.shape == (N, Cout, H, W), out.shape
    # Tolerance covers the approx-reciprocal SiLU and bf16 operand rounding.
    assert jnp.allclose(out, ref, atol=5e-3, rtol=5e-3), \
        float(jnp.max(jnp.abs(out - ref)))

    print("KERNEL_OK")
</pallas_src>

<mosaic_0001>
module attributes {stable_mosaic.version = 11 : i64} {
  func.func @_conv_bn_silu_kernel(%arg0: i32, %arg1: i32, %arg2: memref<1x18x16x16xbf16, #tpu.memory_space<vmem>>, %arg3: memref<48x128xbf16, #tpu.memory_space<vmem>>, %arg4: memref<1x8xf32, #tpu.memory_space<vmem>>, %arg5: memref<1x16x16x8xf32, #tpu.memory_space<vmem>>) attributes {dimension_semantics = [#tpu.dimension_semantics<parallel>, #tpu.dimension_semantics<arbitrary>], iteration_bounds = array<i64: 2, 1>, scalar_prefetch = 0 : i64, scratch_operands = 0 : i64, tpu.core_type = #tpu.core_type<tc>, window_params = [{transform_indices = @transform_0, window_bounds = array<i64: 1, 18, 16, 16>}, {pipeline_mode = #tpu.pipeline_mode<synchronous>, transform_indices = @transform_1, window_bounds = array<i64: 48, 128>}, {pipeline_mode = #tpu.pipeline_mode<synchronous>, transform_indices = @transform_2, window_bounds = array<i64: 1, 8>}, {transform_indices = @transform_3, window_bounds = array<i64: 1, 16, 16, 8>}]} {
    %c16_i32 = arith.constant 16 : i32
    %0 = arith.muli %arg1, %c16_i32 : i32
    %1 = tpu.assume_multiple %0, 16 : i32
    %c0_i32 = arith.constant 0 : i32
    %2 = arith.addi %1, %c0_i32 : i32
    %c0 = arith.constant 0 : index
    %3 = arith.index_cast %2 : i32 to index
    %c0_0 = arith.constant 0 : index
    %c0_1 = arith.constant 0 : index
    %4 = vector.load %arg2[%c0, %3, %c0_0, %c0_1] : memref<1x18x16x16xbf16, #tpu.memory_space<vmem>>, vector<1x16x16x16xbf16>
    %5 = vector.shape_cast %4 : vector<1x16x16x16xbf16> to vector<16x16x16xbf16>
    %c1_i32 = arith.constant 1 : i32
    %6 = arith.addi %1, %c1_i32 : i32
    %c0_2 = arith.constant 0 : index
    %7 = arith.index_cast %6 : i32 to index
    %c0_3 = arith.constant 0 : index
    %c0_4 = arith.constant 0 : index
    %8 = vector.load %arg2[%c0_2, %7, %c0_3, %c0_4] : memref<1x18x16x16xbf16, #tpu.memory_space<vmem>>, vector<1x16x16x16xbf16>
    %9 = vector.shape_cast %8 : vector<1x16x16x16xbf16> to vector<16x16x16xbf16>
    %c2_i32 = arith.constant 2 : i32
    %10 = arith.addi %1, %c2_i32 : i32
    %c0_5 = arith.constant 0 : index
    %11 = arith.index_cast %10 : i32 to index
    %c0_6 = arith.constant 0 : index
    %c0_7 = arith.constant 0 : index
    %12 = vector.load %arg2[%c0_5, %11, %c0_6, %c0_7] : memref<1x18x16x16xbf16, #tpu.memory_space<vmem>>, vector<1x16x16x16xbf16>
    %13 = vector.shape_cast %12 : vector<1x16x16x16xbf16> to vector<16x16x16xbf16>
    %14 = tpu.concatenate %5, %9, %13 in 2 : vector<16x16x16xbf16>, vector<16x16x16xbf16>, vector<16x16x16xbf16> -> vector<16x16x48xbf16>
    %15 = vector.shape_cast %14 : vector<16x16x48xbf16> to vector<256x48xbf16>
    %c0_8 = arith.constant 0 : index
    %c0_9 = arith.constant 0 : index
    %16 = vector.load %arg3[%c0_8, %c0_9] : memref<48x128xbf16, #tpu.memory_space<vmem>>, vector<48x128xbf16>
    %cst = arith.constant dense<0.000000e+00> : vector<256x128xf32>
    %17 = tpu.matmul %15, %16, %cst {dimension_numbers = #tpu.dot_dimension_numbers<[1], [0], [0], [1], [0, 0, 1, 1], [], []>} : vector<256x48xbf16>, vector<48x128xbf16>, vector<256x128xf32> -> vector<256x128xf32>
    %18 = vector.extract_strided_slice %17 {offsets = [0, 0], sizes = [256, 8], strides = [1, 1]} : vector<256x128xf32> to vector<256x8xf32>
    %c0_10 = arith.constant 0 : index
    %c0_11 = arith.constant 0 : index
    %19 = vector.load %arg4[%c0_10, %c0_11] : memref<1x8xf32, #tpu.memory_space<vmem>>, vector<1x8xf32>
    %20 = vector.shape_cast %19 : vector<1x8xf32> to vector<8xf32>
    %21 = vector.shape_cast %20 : vector<8xf32> to vector<1x8xf32>
    %22 = vector.broadcast %21 : vector<1x8xf32> to vector<256x8xf32>
    %23 = arith.addf %18, %22 : vector<256x8xf32>
    %cst_12 = arith.constant 0.000000e+00 : f32
    %24 = vector.broadcast %cst_12 : f32 to vector<256x8xf32>
    %25 = arith.subf %24, %23 : vector<256x8xf32>
    %26 = math.exp %25 : vector<256x8xf32>
    %cst_13 = arith.constant 1.000000e+00 : f32
    %27 = vector.broadcast %cst_13 : f32 to vector<256x8xf32>
    %28 = arith.addf %27, %26 : vector<256x8xf32>
    %29 = tpu.reciprocal %28 {approx = true} : vector<256x8xf32> -> vector<256x8xf32>
    %30 = arith.mulf %23, %29 : vector<256x8xf32>
    %31 = vector.shape_cast %30 : vector<256x8xf32> to vector<1x16x16x8xf32>
    %c0_14 = arith.constant 0 : index
    %c0_15 = arith.constant 0 : index
    %c0_16 = arith.constant 0 : index
    %c0_17 = arith.constant 0 : index
    %32 = vector.load %arg5[%c0_14, %c0_15, %c0_16, %c0_17] : memref<1x16x16x8xf32, #tpu.memory_space<vmem>>, vector<1x16x16x8xf32>
    tpu.vector_store %arg5[%c0_14, %c0_15, %c0_16, %c0_17], %31 {strides = array<i32>} : memref<1x16x16x8xf32, #tpu.memory_space<vmem>>, vector<1x16x16x8xf32>,
    return
  }
  func.func @transform_0(%arg0: i32, %arg1: i32) -> (i32, i32, i32, i32) {
    %c0_i32 = arith.constant 0 : i32
    %c0_i32_0 = arith.constant 0 : i32
    %c0_i32_1 = arith.constant 0 : i32
    %c0_i32_2 = arith.constant 0 : i32
    return %arg0, %c0_i32, %c0_i32_0, %c0_i32_1 : i32, i32, i32, i32
  }
  func.func @transform_1(%arg0: i32, %arg1: i32) -> (i32, i32) {
    %c0_i32 = arith.constant 0 : i32
    %c0_i32_0 = arith.constant 0 : i32
    %c0_i32_1 = arith.constant 0 : i32
    return %c0_i32, %c0_i32_0 : i32, i32
  }
  func.func @transform_2(%arg0: i32, %arg1: i32) -> (i32, i32) {
    %c0_i32 = arith.constant 0 : i32
    %c0_i32_0 = arith.constant 0 : i32
    %c0_i32_1 = arith.constant 0 : i32
    return %c0_i32, %c0_i32_0 : i32, i32
  }
  func.func @transform_3(%arg0: i32, %arg1: i32) -> (i32, i32, i32, i32) {
    %c0_i32 = arith.constant 0 : i32
    %c0_i32_0 = arith.constant 0 : i32
    %c0_i32_1 = arith.constant 0 : i32
    return %arg0, %arg1, %c0_i32, %c0_i32_0 : i32, i32, i32, i32
  }
}

</mosaic_0001>

<llo_original>
// kernel: tpu_custom_call.1
$region0: #{tpu_custom_call.1}
  #allocation0 [shape = 'u32[]', space=smem, size = 0x4, offset = 0x4, fixed_abs, tag = 'smem constant byte address 0x4 - core index']
  #allocation1 [shape = 'u32[144,128]{1,0:T(1,128)}', space=vmem, size = 0x12000, scoped, tag = 'internal scratch']
  %s0 = inlined_call_operand.vmem [shape: bf16[2,18,16,16], index: 0, kind: input, shape index: {}]
  %s1 = inlined_call_operand.vmem [shape: bf16[48,128], index: 1, kind: input, shape index: {}]
  %s2 = inlined_call_operand.vmem [shape: f32[1,8], index: 2, kind: input, shape index: {}]
  %s3 = inlined_call_operand.vmem [shape: f32[2,16,16,8], index: 3, kind: output, shape index: {}]
  %s4 = sld [smem:[#allocation0]]
  $region45: #{tpu_custom_call.1} parent=0
    _
  %s6 = ssub.s32 1, %s4
  %s7 = scalar_select 0, %s6, %s4
  loop: start=0, step=1, limit=4
  $region2: #{tpu_custom_call.1} parent=0 // loop_pre_header
    _
  $region3: #{tpu_custom_call.1} parent=0 // loop_header
    %s9 = sphi 0, %s13
    %p10 = scmp.ge.s32.totalorder %s9, 4
    %s16 = sphi 0, %s28
    %s17 = sphi 0, %s24
    %s18 = sphi 0, %s16
    %s19 = sphi 0, %s17
    %s20 = sphi 0, %s18
    %s21 = sphi 0, %s19
    %s31 = sphi 0, %s33
    %s34 = sphi 0, %s31
    %s35 = sphi 0, %s34
    %s51 = sphi 0, %s35
    %s55 = sphi 0, %s55
    %s57 = sphi 0, %s55
    %s58 = sphi 0, %s57
    %s72 = sphi 0, %s58
    %s76 = sphi 0, %s76
    %s78 = sphi 0, %s76
    %s79 = sphi 0, %s78
    %s93 = sphi 0, %s79
    %s101 = sphi 0, %s103
    %s104 = sphi 0, %s101
    %s105 = sphi 0, %s104
    %s121 = sphi 0, %s105
  $region4: #{tpu_custom_call.1} parent=0 // loop_header_branch
    %12 = sbr.rel (%p10) target = $region8
  $region5: #{tpu_custom_call.1} parent=0 // loop_body
    %s14 = ssub.s32 %s9, 1
    %s15 = ssub.s32 %s9, 2
    %s22 = sadd.s32 1, %s17
    %p23 = scmp.ge.s32.totalorder %s22, 1
    %s24 = scalar_select %p23, 0, %s22
    %s25 = sadd.s32 1, %s16
    %s26 = scalar_select %p23, %s25, %s16
    %p27 = scmp.ge.s32.totalorder %s26, 2
    %s28 = scalar_select %p27, 0, %s26
    %s29 = ssub.s32 %s16, %s28
    %p30 = scmp.eq.s32.totalorder %s29, 0
    %s32 = sadd.s32 %s31, 1
    %s33 = scalar_select %p30, %s31, %s32
    %p36 = pneg %p30
    %p37 = scmp.eq.s32.totalorder %s9, 1
    %p38 = por %p36, %p37
    %p39 = scmp.ne.s32.totalorder %s31, %s34
    %p40 = scmp.eq.s32.totalorder %s9, 0
    %p41 = por %p39, %p40
    %p42 = scmp.ne.s32.totalorder %s31, %s34
    %p43 = scmp.eq.s32.totalorder %s14, 1
    %p44 = por %p42, %p43
    %p45 = scmp.ne.s32.totalorder %s34, %s35
    %p46 = scmp.eq.s32.totalorder %s14, 0
    %p47 = por %p45, %p46
    %p48 = scmp.ne.s32.totalorder %s34, %s35
    %p49 = scmp.eq.s32.totalorder %s15, 1
    %p50 = por %p48, %p49
    %p52 = scmp.ne.s32.totalorder %s35, %s51
    %p53 = scmp.eq.s32.totalorder %s15, 0
    %p54 = por %p52, %p53
    %s56 = sadd.s32 %s55, 1
    %p59 = scmp.eq.s32.totalorder %s9, 1
    %p60 = scmp.ne.s32.totalorder %s55, %s57
    %p61 = scmp.eq.s32.totalorder %s9, 0
    %p62 = por %p60, %p61
    %p63 = scmp.ne.s32.totalorder %s55, %s57
    %p64 = scmp.eq.s32.totalorder %s14, 1
    %p65 = por %p63, %p64
    %p66 = scmp.ne.s32.totalorder %s57, %s58
    %p67 = scmp.eq.s32.totalorder %s14, 0
    %p68 = por %p66, %p67
    %p69 = scmp.ne.s32.totalorder %s57, %s58
    %p70 = scmp.eq.s32.totalorder %s15, 1
    %p71 = por %p69, %p70
    %p73 = scmp.ne.s32.totalorder %s58, %s72
    %p74 = scmp.eq.s32.totalorder %s15, 0
    %p75 = por %p73, %p74
    %s77 = sadd.s32 %s76, 1
    %p80 = scmp.eq.s32.totalorder %s9, 1
    %p81 = scmp.ne.s32.totalorder %s76, %s78
    %p82 = scmp.eq.s32.totalorder %s9, 0
    %p83 = por %p81, %p82
    %p84 = scmp.ne.s32.totalorder %s76, %s78
    %p85 = scmp.eq.s32.totalorder %s14, 1
    %p86 = por %p84, %p85
    %p87 = scmp.ne.s32.totalorder %s78, %s79
    %p88 = scmp.eq.s32.totalorder %s14, 0
    %p89 = por %p87, %p88
    %p90 = scmp.ne.s32.totalorder %s78, %s79
    %p91 = scmp.eq.s32.totalorder %s15, 1
    %p92 = por %p90, %p91
    %p94 = scmp.ne.s32.totalorder %s79, %s93
    %p95 = scmp.eq.s32.totalorder %s15, 0
    %p96 = por %p94, %p95
    %s97 = ssub.s32 %s16, %s28
    %s98 = ssub.s32 %s17, %s24
    %s99 = sor.u32 %s97, %s98
    %p100 = scmp.eq.s32.totalorder %s99, 0
    %s102 = sadd.s32 %s101, 1
    %s103 = scalar_select %p100, %s101, %s102
    %p106 = pneg %p100
    %p107 = scmp.eq.s32.totalorder %s9, 1
    %p108 = por %p106, %p107
    %p109 = scmp.ne.s32.totalorder %s101, %s104
    %p110 = scmp.eq.s32.totalorder %s9, 0
    %p111 = por %p109, %p110
    %p112 = scmp.ne.s32.totalorder %s101, %s104
    %p113 = scmp.eq.s32.totalorder %s14, 1
    %p114 = por %p112, %p113
    %p115 = scmp.ne.s32.totalorder %s104, %s105
    %p116 = scmp.eq.s32.totalorder %s14, 0
    %p117 = por %p115, %p116
    %p118 = scmp.ne.s32.totalorder %s104, %s105
    %p119 = scmp.eq.s32.totalorder %s15, 1
    %p120 = por %p118, %p119
    %p122 = scmp.ne.s32.totalorder %s105, %s121
    %p123 = scmp.eq.s32.totalorder %s15, 0
    %p124 = por %p122, %p123
    %p125 = scmp.le.s32.totalorder 1, %s9
    %p126 = scmp.lt.s32.totalorder %s9, 3
    %p127 = pnand %p125, %p126
    %p128 = pneg %p127
    // Predicated region
    $region9: #{tpu_custom_call.1} parent=5 // pred_check
      _
    $region10: #{tpu_custom_call.1} parent=5 // pred_check_branch
      %130 = sbr.rel (%p127) target = $region12
    $region11: #{tpu_custom_call.1} parent=5 // pred_region
      %s131 = ssub.s32 %s9, 1
      // Predicated region
      $region13: #{tpu_custom_call.1} parent=11 // pred_check
        %p132 = pneg %p68
      $region14: #{tpu_custom_call.1} parent=11 // pred_check_branch
        %134 = sbr.rel (%p132) target = $region16
      $region15: #{tpu_custom_call.1} parent=11 // pred_region
        _
      $region16: #{tpu_custom_call.1} parent=11 // pred_fallthru
        _
      // Predicated region
      $region17: #{tpu_custom_call.1} parent=11 // pred_check
        %p135 = pneg %p89
      $region18: #{tpu_custom_call.1} parent=11 // pred_check_branch
        %137 = sbr.rel (%p135) target = $region20
      $region19: #{tpu_custom_call.1} parent=11 // pred_region
        _
      $region20: #{tpu_custom_call.1} parent=11 // pred_fallthru
        _
    $region12: #{tpu_custom_call.1} parent=5 // pred_fallthru
      _
    %p138 = scmp.lt.s32.totalorder %s9, 2
    // Predicated region
    $region21: #{tpu_custom_call.1} parent=5 // pred_check
      %p139 = pneg %p138
    $region22: #{tpu_custom_call.1} parent=5 // pred_check_branch
      %141 = sbr.rel (%p139) target = $region24
    $region23: #{tpu_custom_call.1} parent=5 // pred_region
      // Predicated region
      $region25: #{tpu_custom_call.1} parent=23 // pred_check
        %p142 = pneg %p41
      $region26: #{tpu_custom_call.1} parent=23 // pred_check_branch
        %144 = sbr.rel (%p142) target = $region28
      $region27: #{tpu_custom_call.1} parent=23 // pred_region
        %p145 = scmp.lt.s32.totalorder %s16, 1
        %s146 = scalar_select %p145, %s16, 1
        %s147 = smul.addr %s146, 36
        %s148 = smul.addr %s147, 4
        %s149 = scalar_lea.vmem %s0, %s148
      $region28: #{tpu_custom_call.1} parent=23 // pred_fallthru
        _
    $region24: #{tpu_custom_call.1} parent=5 // pred_fallthru
      _
    %p150 = scmp.le.s32.totalorder 1, %s9
    %p151 = scmp.lt.s32.totalorder %s9, 3
    %p152 = pnand %p150, %p151
    %p153 = pneg %p152
    // Predicated region
    $region29: #{tpu_custom_call.1} parent=5 // pred_check
      _
    $region30: #{tpu_custom_call.1} parent=5 // pred_check_branch
      %155 = sbr.rel (%p152) target = $region32
    $region31: #{tpu_custom_call.1} parent=5 // pred_region
      %s156 = ssub.s32 %s9, 1
      %p157 = scmp.lt.s32.totalorder %s18, 1
      %s158 = scalar_select %p157, %s18, 1
      %s159 = smul.addr %s158, 36
      %s160 = smul.addr %s159, 4
      %s161 = scalar_lea.vmem %s0, %s160
      %p162 = pneg %p47
      %p163 = pneg %p44
      %p164 = pneg %p68
      %p165 = pneg %p65
      %p166 = pneg %p89
      %p167 = pneg %p86
      %p168 = pneg %p117
      %p169 = pneg %p114
      %s170 = smul.u32 16, %s19
      %p171 = scmp.lt.s32.totalorder %s18, 1
      %s172 = scalar_select %p171, %s18, 1
      %p173 = scmp.lt.s32.totalorder %s170, 15
      %s174 = scalar_select %p173, %s170, 15
      %s175 = smul.addr %s174, 2
      %s176 = smul.addr %s172, 32
      %s177 = sadd.s32 %s175, %s176
      %s178 = smul.addr %s177, 8
      %s179 = scalar_lea.vmem %s3, %s178
      %p180 = scmp.lt.s32.totalorder %s18, 1
      %s181 = scalar_select %p180, %s18, 1
      %s182 = smul.addr %s181, 36
      %s183 = smul.addr %s182, 4
      %s184 = scalar_lea.vmem %s0, %s183
      %s185 = smul.u32 16, %s19
      %p186 = scmp.lt.s32.totalorder %s18, 1
      %s187 = scalar_select %p186, %s18, 1
      %p188 = scmp.lt.s32.totalorder %s185, 15
      %s189 = scalar_select %p188, %s185, 15
      %s190 = smul.addr %s189, 2
      %s191 = smul.addr %s187, 32
      %s192 = sadd.s32 %s190, %s191
      %s193 = smul.addr %s192, 8
      %s194 = scalar_lea.vmem %s3, %s193
      %s195 = smul.u32 16, %s19
      %s197 = smul.u32 %s19, 16
      %s198 = smul.u32 %s197, 2
      %s199 = smul.addr %s198, 4
      %s200 = scalar_lea.vmem %s184, %s199
      %v201 = vld [vmem:[%s200] sm:$0xf]
      %v202 = vld [vmem:[%s200 + $0x4] sm:$0xf]
      %v203 = vld [vmem:[%s200 + $0x8] sm:$0xf]
      %v204 = vld [vmem:[%s200 + $0xc] sm:$0xf]
      %v205 = vld [vmem:[%s200 + $0x10] sm:$0xf]
      %v206 = vld [vmem:[%s200 + $0x14] sm:$0xf]
      %v207 = vld [vmem:[%s200 + $0x18] sm:$0xf]
      %v208 = vld [vmem:[%s200 + $0x1c] sm:$0xf]
      %v209 = vld [vmem:[%s200 + $0x20] sm:$0xf]
      %v210 = vld [vmem:[%s200 + $0x24] sm:$0xf]
      %v211 = vld [vmem:[%s200 + $0x28] sm:$0xf]
      %v212 = vld [vmem:[%s200 + $0x2c] sm:$0xf]
      %v213 = vld [vmem:[%s200 + $0x30] sm:$0xf]
      %v214 = vld [vmem:[%s200 + $0x34] sm:$0xf]
      %v215 = vld [vmem:[%s200 + $0x38] sm:$0xf]
      %v216 = vld [vmem:[%s200 + $0x3c] sm:$0xf]
      %v217 = vld [vmem:[%s200 + $0x40] sm:$0xf]
      %v218 = vld [vmem:[%s200 + $0x44] sm:$0xf]
      %v219 = vld [vmem:[%s200 + $0x48] sm:$0xf]
      %v220 = vld [vmem:[%s200 + $0x4c] sm:$0xf]
      %v221 = vld [vmem:[%s200 + $0x50] sm:$0xf]
      %v222 = vld [vmem:[%s200 + $0x54] sm:$0xf]
      %v223 = vld [vmem:[%s200 + $0x58] sm:$0xf]
      %v224 = vld [vmem:[%s200 + $0x5c] sm:$0xf]
      %v225 = vld [vmem:[%s200 + $0x60] sm:$0xf]
      %v226 = vld [vmem:[%s200 + $0x64] sm:$0xf]
      %v227 = vld [vmem:[%s200 + $0x68] sm:$0xf]
      %v228 = vld [vmem:[%s200 + $0x6c] sm:$0xf]
      %v229 = vld [vmem:[%s200 + $0x70] sm:$0xf]
      %v230 = vld [vmem:[%s200 + $0x74] sm:$0xf]
      %v231 = vld [vmem:[%s200 + $0x78] sm:$0xf]
      %v232 = vld [vmem:[%s200 + $0x7c] sm:$0xf]
      %s233 = sadd.s32 %s197, 1
      %s234 = smul.u32 %s233, 2
      %s235 = smul.addr %s234, 4
      %s236 = scalar_lea.vmem %s184, %s235
      %v237 = vld [vmem:[%s236] sm:$0xf]
      %v238 = vld [vmem:[%s236 + $0x4] sm:$0xf]
      %v239 = vld [vmem:[%s236 + $0x8] sm:$0xf]
      %v240 = vld [vmem:[%s236 + $0xc] sm:$0xf]
      %v241 = vld [vmem:[%s236 + $0x10] sm:$0xf]
      %v242 = vld [vmem:[%s236 + $0x14] sm:$0xf]
      %v243 = vld [vmem:[%s236 + $0x18] sm:$0xf]
      %v244 = vld [vmem:[%s236 + $0x1c] sm:$0xf]
      %v245 = vld [vmem:[%s236 + $0x20] sm:$0xf]
      %v246 = vld [vmem:[%s236 + $0x24] sm:$0xf]
      %v247 = vld [vmem:[%s236 + $0x28] sm:$0xf]
      %v248 = vld [vmem:[%s236 + $0x2c] sm:$0xf]
      %v249 = vld [vmem:[%s236 + $0x30] sm:$0xf]
      %v250 = vld [vmem:[%s236 + $0x34] sm:$0xf]
      %v251 = vld [vmem:[%s236 + $0x38] sm:$0xf]
      %v252 = vld [vmem:[%s236 + $0x3c] sm:$0xf]
      %v253 = vld [vmem:[%s236 + $0x40] sm:$0xf]
      %v254 = vld [vmem:[%s236 + $0x44] sm:$0xf]
      %v255 = vld [vmem:[%s236 + $0x48] sm:$0xf]
      %v256 = vld [vmem:[%s236 + $0x4c] sm:$0xf]
      %v257 = vld [vmem:[%s236 + $0x50] sm:$0xf]
      %v258 = vld [vmem:[%s236 + $0x54] sm:$0xf]
      %v259 = vld [vmem:[%s236 + $0x58] sm:$0xf]
      %v260 = vld [vmem:[%s236 + $0x5c] sm:$0xf]
      %v261 = vld [vmem:[%s236 + $0x60] sm:$0xf]
      %v262 = vld [vmem:[%s236 + $0x64] sm:$0xf]
      %v263 = vld [vmem:[%s236 + $0x68] sm:$0xf]
      %v264 = vld [vmem:[%s236 + $0x6c] sm:$0xf]
      %v265 = vld [vmem:[%s236 + $0x70] sm:$0xf]
      %v266 = vld [vmem:[%s236 + $0x74] sm:$0xf]
      %v267 = vld [vmem:[%s236 + $0x78] sm:$0xf]
      %v268 = vld [vmem:[%s236 + $0x7c] sm:$0xf]
      %s269 = sadd.s32 %s197, 2
      %s270 = smul.u32 %s269, 2
      %s271 = smul.addr %s270, 4
      %s272 = scalar_lea.vmem %s184, %s271
      %v273 = vld [vmem:[%s272] sm:$0xf]
      %v274 = vld [vmem:[%s272 + $0x4] sm:$0xf]
      %v275 = vld [vmem:[%s272 + $0x8] sm:$0xf]
      %v276 = vld [vmem:[%s272 + $0xc] sm:$0xf]
      %v277 = vld [vmem:[%s272 + $0x10] sm:$0xf]
      %v278 = vld [vmem:[%s272 + $0x14] sm:$0xf]
      %v279 = vld [vmem:[%s272 + $0x18] sm:$0xf]
      %v280 = vld [vmem:[%s272 + $0x1c] sm:$0xf]
      %v281 = vld [vmem:[%s272 + $0x20] sm:$0xf]
      %v282 = vld [vmem:[%s272 + $0x24] sm:$0xf]
      %v283 = vld [vmem:[%s272 + $0x28] sm:$0xf]
      %v284 = vld [vmem:[%s272 + $0x2c] sm:$0xf]
      %v285 = vld [vmem:[%s272 + $0x30] sm:$0xf]
      %v286 = vld [vmem:[%s272 + $0x34] sm:$0xf]
      %v287 = vld [vmem:[%s272 + $0x38] sm:$0xf]
      %v288 = vld [vmem:[%s272 + $0x3c] sm:$0xf]
      %v289 = vld [vmem:[%s272 + $0x40] sm:$0xf]
      %v290 = vld [vmem:[%s272 + $0x44] sm:$0xf]
      %v291 = vld [vmem:[%s272 + $0x48] sm:$0xf]
      %v292 = vld [vmem:[%s272 + $0x4c] sm:$0xf]
      %v293 = vld [vmem:[%s272 + $0x50] sm:$0xf]
      %v294 = vld [vmem:[%s272 + $0x54] sm:$0xf]
      %v295 = vld [vmem:[%s272 + $0x58] sm:$0xf]
      %v296 = vld [vmem:[%s272 + $0x5c] sm:$0xf]
      %v297 = vld [vmem:[%s272 + $0x60] sm:$0xf]
      %v298 = vld [vmem:[%s272 + $0x64] sm:$0xf]
      %v299 = vld [vmem:[%s272 + $0x68] sm:$0xf]
      %v300 = vld [vmem:[%s272 + $0x6c] sm:$0xf]
      %v301 = vld [vmem:[%s272 + $0x70] sm:$0xf]
      %v302 = vld [vmem:[%s272 + $0x74] sm:$0xf]
      %v303 = vld [vmem:[%s272 + $0x78] sm:$0xf]
      %v304 = vld [vmem:[%s272 + $0x7c] sm:$0xf]
      %v337 = vunpack.c.l.b16 %v201
      %v338 = vunpack.c.l.b16 %v202
      %v339 = vunpack.c.l.b16 %v203
      %v340 = vunpack.c.l.b16 %v204
      %v341 = vunpack.c.l.b16 %v205
      %v342 = vunpack.c.l.b16 %v206
      %v343 = vunpack.c.l.b16 %v207
      %v344 = vunpack.c.l.b16 %v208
      %v345 = vunpack.c.l.b16 %v209
      %v346 = vunpack.c.l.b16 %v210
      %v347 = vunpack.c.l.b16 %v211
      %v348 = vunpack.c.l.b16 %v212
      %v349 = vunpack.c.l.b16 %v213
      %v350 = vunpack.c.l.b16 %v214
      %v351 = vunpack.c.l.b16 %v215
      %v352 = vunpack.c.l.b16 %v216
      %v353 = vunpack.c.l.b16 %v217
      %v354 = vunpack.c.l.b16 %v218
      %v355 = vunpack.c.l.b16 %v219
      %v356 = vunpack.c.l.b16 %v220
      %v357 = vunpack.c.l.b16 %v221
      %v358 = vunpack.c.l.b16 %v222
      %v359 = vunpack.c.l.b16 %v223
      %v360 = vunpack.c.l.b16 %v224
      %v361 = vunpack.c.l.b16 %v225
      %v362 = vunpack.c.l.b16 %v226
      %v363 = vunpack.c.l.b16 %v227
      %v364 = vunpack.c.l.b16 %v228
      %v365 = vunpack.c.l.b16 %v229
      %v366 = vunpack.c.l.b16 %v230
      %v367 = vunpack.c.l.b16 %v231
      %v368 = vunpack.c.l.b16 %v232
      %v369 = vpack.c.b16 %v338, %v337
      %v370 = vpack.c.b16 %v340, %v339
      %v371 = vpack.c.b16 %v342, %v341
      %v372 = vpack.c.b16 %v344, %v343
      %v373 = vpack.c.b16 %v346, %v345
      %v374 = vpack.c.b16 %v348, %v347
      %v375 = vpack.c.b16 %v350, %v349
      %v376 = vpack.c.b16 %v352, %v351
      %v377 = vpack.c.b16 %v354, %v353
      %v378 = vpack.c.b16 %v356, %v355
      %v379 = vpack.c.b16 %v358, %v357
      %v380 = vpack.c.b16 %v360, %v359
      %v381 = vpack.c.b16 %v362, %v361
      %v382 = vpack.c.b16 %v364, %v363
      %v383 = vpack.c.b16 %v366, %v365
      %v384 = vpack.c.b16 %v368, %v367
      %v417 = vunpack.c.l.b16 %v237
      %v418 = vunpack.c.l.b16 %v238
      %v419 = vunpack.c.l.b16 %v239
      %v420 = vunpack.c.l.b16 %v240
      %v421 = vunpack.c.l.b16 %v241
      %v422 = vunpack.c.l.b16 %v242
      %v423 = vunpack.c.l.b16 %v243
      %v424 = vunpack.c.l.b16 %v244
      %v425 = vunpack.c.l.b16 %v245
      %v426 = vunpack.c.l.b16 %v246
      %v427 = vunpack.c.l.b16 %v247
      %v428 = vunpack.c.l.b16 %v248
      %v429 = vunpack.c.l.b16 %v249
      %v430 = vunpack.c.l.b16 %v250
      %v431 = vunpack.c.l.b16 %v251
      %v432 = vunpack.c.l.b16 %v252
      %v433 = vunpack.c.l.b16 %v253
      %v434 = vunpack.c.l.b16 %v254
      %v435 = vunpack.c.l.b16 %v255
      %v436 = vunpack.c.l.b16 %v256
      %v437 = vunpack.c.l.b16 %v257
      %v438 = vunpack.c.l.b16 %v258
      %v439 = vunpack.c.l.b16 %v259
      %v440 = vunpack.c.l.b16 %v260
      %v441 = vunpack.c.l.b16 %v261
      %v442 = vunpack.c.l.b16 %v262
      %v443 = vunpack.c.l.b16 %v263
      %v444 = vunpack.c.l.b16 %v264
      %v445 = vunpack.c.l.b16 %v265
      %v446 = vunpack.c.l.b16 %v266
      %v447 = vunpack.c.l.b16 %v267
      %v448 = vunpack.c.l.b16 %v268
      %v449 = vpack.c.b16 %v418, %v417
      %v450 = vpack.c.b16 %v420, %v419
      %v451 = vpack.c.b16 %v422, %v421
      %v452 = vpack.c.b16 %v424, %v423
      %v453 = vpack.c.b16 %v426, %v425
      %v454 = vpack.c.b16 %v428, %v427
      %v455 = vpack.c.b16 %v430, %v429
      %v456 = vpack.c.b16 %v432, %v431
      %v457 = vpack.c.b16 %v434, %v433
      %v458 = vpack.c.b16 %v436, %v435
      %v459 = vpack.c.b16 %v438, %v437
      %v460 = vpack.c.b16 %v440, %v439
      %v461 = vpack.c.b16 %v442, %v441
      %v462 = vpack.c.b16 %v444, %v443
      %v463 = vpack.c.b16 %v446, %v445
      %v464 = vpack.c.b16 %v448, %v447
      %465 = vrot.lane.b32.xlu0 %v449, 16
      %v466 = vpop.permute.xlu0 %465
      %467 = vrot.lane.b32.xlu0 %v450, 16
      %v468 = vpop.permute.xlu0 %467
      %469 = vrot.lane.b32.xlu0 %v451, 16
      %v470 = vpop.permute.xlu0 %469
      %471 = vrot.lane.b32.xlu0 %v452, 16
      %v472 = vpop.permute.xlu0 %471
      %473 = vrot.lane.b32.xlu0 %v453, 16
      %v474 = vpop.permute.xlu0 %473
      %475 = vrot.lane.b32.xlu0 %v454, 16
      %v476 = vpop.permute.xlu0 %475
      %477 = vrot.lane.b32.xlu0 %v455, 16
      %v478 = vpop.permute.xlu0 %477
      %479 = vrot.lane.b32.xlu0 %v456, 16
      %v480 = vpop.permute.xlu0 %479
      %481 = vrot.lane.b32.xlu0 %v457, 16
      %v482 = vpop.permute.xlu0 %481
      %483 = vrot.lane.b32.xlu0 %v458, 16
      %v484 = vpop.permute.xlu0 %483
      %485 = vrot.lane.b32.xlu0 %v459, 16
      %v486 = vpop.permute.xlu0 %485
      %487 = vrot.lane.b32.xlu0 %v460, 16
      %v488 = vpop.permute.xlu0 %487
      %489 = vrot.lane.b32.xlu0 %v461, 16
      %v490 = vpop.permute.xlu0 %489
      %491 = vrot.lane.b32.xlu0 %v462, 16
      %v492 = vpop.permute.xlu0 %491
      %493 = vrot.lane.b32.xlu0 %v463, 16
      %v494 = vpop.permute.xlu0 %493
      %495 = vrot.lane.b32.xlu0 %v464, 16
      %v496 = vpop.permute.xlu0 %495
      %v529 = vunpack.c.l.b16 %v273
      %v530 = vunpack.c.l.b16 %v274
      %v531 = vunpack.c.l.b16 %v275
      %v532 = vunpack.c.l.b16 %v276
      %v533 = vunpack.c.l.b16 %v277
      %v534 = vunpack.c.l.b16 %v278
      %v535 = vunpack.c.l.b16 %v279
      %v536 = vunpack.c.l.b16 %v280
      %v537 = vunpack.c.l.b16 %v281
      %v538 = vunpack.c.l.b16 %v282
      %v539 = vunpack.c.l.b16 %v283
      %v540 = vunpack.c.l.b16 %v284
      %v541 = vunpack.c.l.b16 %v285
      %v542 = vunpack.c.l.b16 %v286
      %v543 = vunpack.c.l.b16 %v287
      %v544 = vunpack.c.l.b16 %v288
      %v545 = vunpack.c.l.b16 %v289
      %v546 = vunpack.c.l.b16 %v290
      %v547 = vunpack.c.l.b16 %v291
      %v548 = vunpack.c.l.b16 %v292
      %v549 = vunpack.c.l.b16 %v293
      %v550 = vunpack.c.l.b16 %v294
      %v551 = vunpack.c.l.b16 %v295
      %v552 = vunpack.c.l.b16 %v296
      %v553 = vunpack.c.l.b16 %v297
      %v554 = vunpack.c.l.b16 %v298
      %v555 = vunpack.c.l.b16 %v299
      %v556 = vunpack.c.l.b16 %v300
      %v557 = vunpack.c.l.b16 %v301
      %v558 = vunpack.c.l.b16 %v302
      %v559 = vunpack.c.l.b16 %v303
      %v560 = vunpack.c.l.b16 %v304
      %v561 = vpack.c.b16 %v530, %v529
      %v562 = vpack.c.b16 %v532, %v531
      %v563 = vpack.c.b16 %v534, %v533
      %v564 = vpack.c.b16 %v536, %v535
      %v565 = vpack.c.b16 %v538, %v537
      %v566 = vpack.c.b16 %v540, %v539
      %v567 = vpack.c.b16 %v542, %v541
      %v568 = vpack.c.b16 %v544, %v543
      %v569 = vpack.c.b16 %v546, %v545
      %v570 = vpack.c.b16 %v548, %v547
      %v571 = vpack.c.b16 %v550, %v549
      %v572 = vpack.c.b16 %v552, %v551
      %v573 = vpack.c.b16 %v554, %v553
      %v574 = vpack.c.b16 %v556, %v555
      %v575 = vpack.c.b16 %v558, %v557
      %v576 = vpack.c.b16 %v560, %v559
      %577 = vrot.lane.b32.xlu0 %v561, 32
      %v578 = vpop.permute.xlu0 %577
      %579 = vrot.lane.b32.xlu0 %v562, 32
      %v580 = vpop.permute.xlu0 %579
      %581 = vrot.lane.b32.xlu0 %v563, 32
      %v582 = vpop.permute.xlu0 %581
      %583 = vrot.lane.b32.xlu0 %v564, 32
      %v584 = vpop.permute.xlu0 %583
      %585 = vrot.lane.b32.xlu0 %v565, 32
      %v586 = vpop.permute.xlu0 %585
      %587 = vrot.lane.b32.xlu0 %v566, 32
      %v588 = vpop.permute.xlu0 %587
      %589 = vrot.lane.b32.xlu0 %v567, 32
      %v590 = vpop.permute.xlu0 %589
      %591 = vrot.lane.b32.xlu0 %v568, 32
      %v592 = vpop.permute.xlu0 %591
      %593 = vrot.lane.b32.xlu0 %v569, 32
      %v594 = vpop.permute.xlu0 %593
      %595 = vrot.lane.b32.xlu0 %v570, 32
      %v596 = vpop.permute.xlu0 %595
      %597 = vrot.lane.b32.xlu0 %v571, 32
      %v598 = vpop.permute.xlu0 %597
      %599 = vrot.lane.b32.xlu0 %v572, 32
      %v600 = vpop.permute.xlu0 %599
      %601 = vrot.lane.b32.xlu0 %v573, 32
      %v602 = vpop.permute.xlu0 %601
      %603 = vrot.lane.b32.xlu0 %v574, 32
      %v604 = vpop.permute.xlu0 %603
      %605 = vrot.lane.b32.xlu0 %v575, 32
      %v606 = vpop.permute.xlu0 %605
      %607 = vrot.lane.b32.xlu0 %v576, 32
      %v608 = vpop.permute.xlu0 %607
      %vm609 = vcmask 130048
      %v612 = vsel %vm609, %v369, %v466
      %v615 = vsel %vm609, %v370, %v468
      %v618 = vsel %vm609, %v371, %v470
      %v621 = vsel %vm609, %v372, %v472
      %v624 = vsel %vm609, %v373, %v474
      %v627 = vsel %vm609, %v374, %v476
      %v630 = vsel %vm609, %v375, %v478
      %v633 = vsel %vm609, %v376, %v480
      %v636 = vsel %vm609, %v377, %v482
      %v639 = vsel %vm609, %v378, %v484
      %v642 = vsel %vm609, %v379, %v486
      %v645 = vsel %vm609, %v380, %v488
      %v648 = vsel %vm609, %v381, %v490
      %v651 = vsel %vm609, %v382, %v492
      %v654 = vsel %vm609, %v383, %v494
      %v657 = vsel %vm609, %v384, %v496
      %vm658 = vcmask 261120
      %v660 = vsel %vm658, %v612, %v578
      %v662 = vsel %vm658, %v615, %v580
      %v664 = vsel %vm658, %v618, %v582
      %v666 = vsel %vm658, %v621, %v584
      %v668 = vsel %vm658, %v624, %v586
      %v670 = vsel %vm658, %v627, %v588
      %v672 = vsel %vm658, %v630, %v590
      %v674 = vsel %vm658, %v633, %v592
      %v676 = vsel %vm658, %v636, %v594
      %v678 = vsel %vm658, %v639, %v596
      %v680 = vsel %vm658, %v642, %v598
      %v682 = vsel %vm658, %v645, %v600
      %v684 = vsel %vm658, %v648, %v602
      %v686 = vsel %vm658, %v651, %v604
      %v688 = vsel %vm658, %v654, %v606
      %v690 = vsel %vm658, %v657, %v608
      %v691 = vld [vmem:[%s1] sm:$0xf]
      %v692 = vld [vmem:[%s1 + $0x4] sm:$0xf]
      %v693 = vld [vmem:[%s1 + $0x8] sm:$0xf]
      %v694 = vld [vmem:[%s1 + $0xc] sm:$0xf]
      %v695 = vld [vmem:[%s1 + $0x10] sm:$0xf]
      %v696 = vld [vmem:[%s1 + $0x14] sm:$0xf]
      %v703 = vunpack.c.l.b16 %v691
      %v704 = vunpack.c.l.b16 %v692
      %v705 = vunpack.c.l.b16 %v693
      %v706 = vunpack.c.l.b16 %v694
      %v707 = vunpack.c.l.b16 %v695
      %v708 = vunpack.c.l.b16 %v696
      %v709 = vpack.c.b16 %v704, %v703
      %v710 = vpack.c.b16 %v706, %v705
      %v711 = vpack.c.b16 %v708, %v707
      %vm715 = vcmask 392192
      %v716 = vsel %vm715, %v660, 0
      %v718 = vsel %vm715, %v662, 0
      %v720 = vsel %vm715, %v664, 0
      %v722 = vsel %vm715, %v666, 0
      %v724 = vsel %vm715, %v668, 0
      %v726 = vsel %vm715, %v670, 0
      %v728 = vsel %vm715, %v672, 0
      %v730 = vsel %vm715, %v674, 0
      %v732 = vsel %vm715, %v676, 0
      %v734 = vsel %vm715, %v678, 0
      %v736 = vsel %vm715, %v680, 0
      %v738 = vsel %vm715, %v682, 0
      %v740 = vsel %vm715, %v684, 0
      %v742 = vsel %vm715, %v686, 0
      %v744 = vsel %vm715, %v688, 0
      %v746 = vsel %vm715, %v690, 0
      %748 = vmatprep.subr.bf16.mxu0 0
      %749 = vmatpush1.bf16.msra.mxu0 0
      %750 = vmatprep.subr.bf16.mxu0 0
      %751 = vmatpush1.bf16.msra.mxu0 0
      %752 = vmatprep.subr.bf16.mxu0 0
      %753 = vmatpush1.bf16.msra.mxu0 0
      %754 = vmatprep.subr.bf16.mxu0 0
      %755 = vmatpush1.bf16.msra.mxu0 0
      %756 = vmatprep.subr.bf16.mxu0 0
      %757 = vmatpush1.bf16.msra.mxu0 0
      %758 = vmatprep.subr.bf16.mxu0 0
      %759 = vmatpush1.bf16.msra.mxu0 %v711
      %760 = vmatprep.subr.bf16.mxu0 0
      %761 = vmatpush1.bf16.msra.mxu0 %v710
      %762 = vmatprep.subr.bf16.mxu0 0
      %763 = vmatpush1.bf16.msra.mxu0 %v709
      %764 = vmatprep.subr.bf16.mxu0 0
      %765 = vmatpush2.bf16.msra.mxu0 0
      %766 = vmatprep.subr.bf16.mxu0 0
      %767 = vmatpush2.bf16.msra.mxu0 0
      %768 = vmatprep.subr.bf16.mxu0 0
      %769 = vmatpush2.bf16.msra.mxu0 0
      %770 = vmatprep.subr.bf16.mxu0 0
      %771 = vmatpush2.bf16.msra.mxu0 0
      %772 = vmatprep.subr.bf16.mxu0 0
      %773 = vmatpush2.bf16.msra.mxu0 0
      %774 = vmatprep.subr.bf16.mxu0 0
      %775 = vmatpush2.bf16.msra.mxu0 0
      %776 = vmatprep.subr.bf16.mxu0 0
      %777 = vmatpush2.bf16.msra.mxu0 0
      %778 = vmatprep.subr.bf16.mxu0 0
      %779 = vmatpush2.bf16.msra.mxu0 0
      %780 = vmatprep.mubr.bf16.mxu0 0
      %781 = vmatmul.mubr.bf16.gmra.mxu0 %v716
      %v782 = vpop.f32.mrf.mxu0
      %v783 = vadd.f32 0.0, %v782
      %v784 = vpop.f32.mrf.mxu0
      %v785 = vpop.f32.mrf.mxu0
      %v786 = vadd.f32 0.0, %v785
      %v787 = vpop.f32.mrf.mxu0
      %788 = vmatprep.mubr.bf16.mxu0 0
      %789 = vmatmul.mubr.bf16.gmra.mxu0 %v718
      %v790 = vpop.f32.mrf.mxu0
      %v791 = vadd.f32 0.0, %v790
      %v792 = vpop.f32.mrf.mxu0
      %v793 = vpop.f32.mrf.mxu0
      %v794 = vadd.f32 0.0, %v793
      %v795 = vpop.f32.mrf.mxu0
      %796 = vmatprep.mubr.bf16.mxu0 0
      %797 = vmatmul.mubr.bf16.gmra.mxu0 %v720
      %v798 = vpop.f32.mrf.mxu0
      %v799 = vadd.f32 0.0, %v798
      %v800 = vpop.f32.mrf.mxu0
      %v801 = vpop.f32.mrf.mxu0
      %v802 = vadd.f32 0.0, %v801
      %v803 = vpop.f32.mrf.mxu0
      %804 = vmatprep.mubr.bf16.mxu0 0
      %805 = vmatmul.mubr.bf16.gmra.mxu0 %v722
      %v806 = vpop.f32.mrf.mxu0
      %v807 = vadd.f32 0.0, %v806
      %v808 = vpop.f32.mrf.mxu0
      %v809 = vpop.f32.mrf.mxu0
      %v810 = vadd.f32 0.0, %v809
      %v811 = vpop.f32.mrf.mxu0
      %812 = vmatprep.mubr.bf16.mxu0 0
      %813 = vmatmul.mubr.bf16.gmra.mxu0 %v724
      %v814 = vpop.f32.mrf.mxu0
      %v815 = vadd.f32 0.0, %v814
      %v816 = vpop.f32.mrf.mxu0
      %v817 = vpop.f32.mrf.mxu0
      %v818 = vadd.f32 0.0, %v817
      %v819 = vpop.f32.mrf.mxu0
      %820 = vmatprep.mubr.bf16.mxu0 0
      %821 = vmatmul.mubr.bf16.gmra.mxu0 %v726
      %v822 = vpop.f32.mrf.mxu0
      %v823 = vadd.f32 0.0, %v822
      %v824 = vpop.f32.mrf.mxu0
      %v825 = vpop.f32.mrf.mxu0
      %v826 = vadd.f32 0.0, %v825
      %v827 = vpop.f32.mrf.mxu0
      %828 = vmatprep.mubr.bf16.mxu0 0
      %829 = vmatmul.mubr.bf16.gmra.mxu0 %v728
      %v830 = vpop.f32.mrf.mxu0
      %v831 = vadd.f32 0.0, %v830
      %v832 = vpop.f32.mrf.mxu0
      %v833 = vpop.f32.mrf.mxu0
      %v834 = vadd.f32 0.0, %v833
      %v835 = vpop.f32.mrf.mxu0
      %836 = vmatprep.mubr.bf16.mxu0 0
      %837 = vmatmul.mubr.bf16.gmra.mxu0 %v730
      %v838 = vpop.f32.mrf.mxu0
      %v839 = vadd.f32 0.0, %v838
      %v840 = vpop.f32.mrf.mxu0
      %v841 = vpop.f32.mrf.mxu0
      %v842 = vadd.f32 0.0, %v841
      %v843 = vpop.f32.mrf.mxu0
      %844 = vmatprep.mubr.bf16.mxu0 0
      %845 = vmatmul.mubr.bf16.gmra.mxu0 %v732
      %v846 = vpop.f32.mrf.mxu0
      %v847 = vadd.f32 0.0, %v846
      %v848 = vpop.f32.mrf.mxu0
      %v849 = vpop.f32.mrf.mxu0
      %v850 = vadd.f32 0.0, %v849
      %v851 = vpop.f32.mrf.mxu0
      %852 = vmatprep.mubr.bf16.mxu0 0
      %853 = vmatmul.mubr.bf16.gmra.mxu0 %v734
      %v854 = vpop.f32.mrf.mxu0
      %v855 = vadd.f32 0.0, %v854
      %v856 = vpop.f32.mrf.mxu0
      %v857 = vpop.f32.mrf.mxu0
      %v858 = vadd.f32 0.0, %v857
      %v859 = vpop.f32.mrf.mxu0
      %860 = vmatprep.mubr.bf16.mxu0 0
      %861 = vmatmul.mubr.bf16.gmra.mxu0 %v736
      %v862 = vpop.f32.mrf.mxu0
      %v863 = vadd.f32 0.0, %v862
      %v864 = vpop.f32.mrf.mxu0
      %v865 = vpop.f32.mrf.mxu0
      %v866 = vadd.f32 0.0, %v865
      %v867 = vpop.f32.mrf.mxu0
      %868 = vmatprep.mubr.bf16.mxu0 0
      %869 = vmatmul.mubr.bf16.gmra.mxu0 %v738
      %v870 = vpop.f32.mrf.mxu0
      %v871 = vadd.f32 0.0, %v870
      %v872 = vpop.f32.mrf.mxu0
      %v873 = vpop.f32.mrf.mxu0
      %v874 = vadd.f32 0.0, %v873
      %v875 = vpop.f32.mrf.mxu0
      %876 = vmatprep.mubr.bf16.mxu0 0
      %877 = vmatmul.mubr.bf16.gmra.mxu0 %v740
      %v878 = vpop.f32.mrf.mxu0
      %v879 = vadd.f32 0.0, %v878
      %v880 = vpop.f32.mrf.mxu0
      %v881 = vpop.f32.mrf.mxu0
      %v882 = vadd.f32 0.0, %v881
      %v883 = vpop.f32.mrf.mxu0
      %884 = vmatprep.mubr.bf16.mxu0 0
      %885 = vmatmul.mubr.bf16.gmra.mxu0 %v742
      %v886 = vpop.f32.mrf.mxu0
      %v887 = vadd.f32 0.0, %v886
      %v888 = vpop.f32.mrf.mxu0
      %v889 = vpop.f32.mrf.mxu0
      %v890 = vadd.f32 0.0, %v889
      %v891 = vpop.f32.mrf.mxu0
      %892 = vmatprep.mubr.bf16.mxu0 0
      %893 = vmatmul.mubr.bf16.gmra.mxu0 %v744
      %v894 = vpop.f32.mrf.mxu0
      %v895 = vadd.f32 0.0, %v894
      %v896 = vpop.f32.mrf.mxu0
      %v897 = vpop.f32.mrf.mxu0
      %v898 = vadd.f32 0.0, %v897
      %v899 = vpop.f32.mrf.mxu0
      %900 = vmatprep.mubr.bf16.mxu0 0
      %901 = vmatmul.mubr.bf16.gmra.mxu0 %v746
      %v902 = vpop.f32.mrf.mxu0
      %v903 = vadd.f32 0.0, %v902
      %v904 = vpop.f32.mrf.mxu0
      %v905 = vpop.f32.mrf.mxu0
      %v906 = vadd.f32 0.0, %v905
      %v907 = vpop.f32.mrf.mxu0
      %908 = vdwg.mxu0
      %v909 = vld [vmem:[%s2] sm:$0x1]
      %v911 = vlaneseq
      %v912 = vshrl.u32 %v911, 7
      %v913 = vsub.s32 0, %v912
      %v914 = vrot.slane %v909, %v913
      %v916 = vadd.f32 %v783, %v914
      %v917 = vadd.f32 %v786, %v914
      %v918 = vadd.f32 %v791, %v914
      %v919 = vadd.f32 %v794, %v914
      %v920 = vadd.f32 %v799, %v914
      %v921 = vadd.f32 %v802, %v914
      %v922 = vadd.f32 %v807, %v914
      %v923 = vadd.f32 %v810, %v914
      %v924 = vadd.f32 %v815, %v914
      %v925 = vadd.f32 %v818, %v914
      %v926 = vadd.f32 %v823, %v914
      %v927 = vadd.f32 %v826, %v914
      %v928 = vadd.f32 %v831, %v914
      %v929 = vadd.f32 %v834, %v914
      %v930 = vadd.f32 %v839, %v914
      %v931 = vadd.f32 %v842, %v914
      %v932 = vadd.f32 %v847, %v914
      %v933 = vadd.f32 %v850, %v914
      %v934 = vadd.f32 %v855, %v914
      %v935 = vadd.f32 %v858, %v914
      %v936 = vadd.f32 %v863, %v914
      %v937 = vadd.f32 %v866, %v914
      %v938 = vadd.f32 %v871, %v914
      %v939 = vadd.f32 %v874, %v914
      %v940 = vadd.f32 %v879, %v914
      %v941 = vadd.f32 %v882, %v914
      %v942 = vadd.f32 %v887, %v914
      %v943 = vadd.f32 %v890, %v914
      %v944 = vadd.f32 %v895, %v914
      %v945 = vadd.f32 %v898, %v914
      %v946 = vadd.f32 %v903, %v914
      %v947 = vadd.f32 %v906, %v914
      %v948 = vsub.f32 0.0, %v916
      %v949 = vsub.f32 0.0, %v917
      %v950 = vsub.f32 0.0, %v918
      %v951 = vsub.f32 0.0, %v919
      %v952 = vsub.f32 0.0, %v920
      %v953 = vsub.f32 0.0, %v921
      %v954 = vsub.f32 0.0, %v922
      %v955 = vsub.f32 0.0, %v923
      %v956 = vsub.f32 0.0, %v924
      %v957 = vsub.f32 0.0, %v925
      %v958 = vsub.f32 0.0, %v926
      %v959 = vsub.f32 0.0, %v927
      %v960 = vsub.f32 0.0, %v928
      %v961 = vsub.f32 0.0, %v929
      %v962 = vsub.f32 0.0, %v930
      %v963 = vsub.f32 0.0, %v931
      %v964 = vsub.f32 0.0, %v932
      %v965 = vsub.f32 0.0, %v933
      %v966 = vsub.f32 0.0, %v934
      %v967 = vsub.f32 0.0, %v935
      %v968 = vsub.f32 0.0, %v936
      %v969 = vsub.f32 0.0, %v937
      %v970 = vsub.f32 0.0, %v938
      %v971 = vsub.f32 0.0, %v939
      %v972 = vsub.f32 0.0, %v940
      %v973 = vsub.f32 0.0, %v941
      %v974 = vsub.f32 0.0, %v942
      %v975 = vsub.f32 0.0, %v943
      %v976 = vsub.f32 0.0, %v944
      %v977 = vsub.f32 0.0, %v945
      %v978 = vsub.f32 0.0, %v946
      %v979 = vsub.f32 0.0, %v947
      %v980 = vmul.f32 %v948, 1.442695
      %v981 = vpow.pop %v980
      %v982 = vmul.f32 %v949, 1.442695
      %v983 = vpow.pop %v982
      %v984 = vmul.f32 %v950, 1.442695
      %v985 = vpow.pop %v984
      %v986 = vmul.f32 %v951, 1.442695
      %v987 = vpow.pop %v986
      %v988 = vmul.f32 %v952, 1.442695
      %v989 = vpow.pop %v988
      %v990 = vmul.f32 %v953, 1.442695
      %v991 = vpow.pop %v990
      %v992 = vmul.f32 %v954, 1.442695
      %v993 = vpow.pop %v992
      %v994 = vmul.f32 %v955, 1.442695
      %v995 = vpow.pop %v994
      %v996 = vmul.f32 %v956, 1.442695
      %v997 = vpow.pop %v996
      %v998 = vmul.f32 %v957, 1.442695
      %v999 = vpow.pop %v998
      %v1000 = vmul.f32 %v958, 1.442695
      %v1001 = vpow.pop %v1000
      %v1002 = vmul.f32 %v959, 1.442695
      %v1003 = vpow.pop %v1002
      %v1004 = vmul.f32 %v960, 1.442695
      %v1005 = vpow.pop %v1004
      %v1006 = vmul.f32 %v961, 1.442695
      %v1007 = vpow.pop %v1006
      %v1008 = vmul.f32 %v962, 1.442695
      %v1009 = vpow.pop %v1008
      %v1010 = vmul.f32 %v963, 1.442695
      %v1011 = vpow.pop %v1010
      %v1012 = vmul.f32 %v964, 1.442695
      %v1013 = vpow.pop %v1012
      %v1014 = vmul.f32 %v965, 1.442695
      %v1015 = vpow.pop %v1014
      %v1016 = vmul.f32 %v966, 1.442695
      %v1017 = vpow.pop %v1016
      %v1018 = vmul.f32 %v967, 1.442695
      %v1019 = vpow.pop %v1018
      %v1020 = vmul.f32 %v968, 1.442695
      %v1021 = vpow.pop %v1020
      %v1022 = vmul.f32 %v969, 1.442695
      %v1023 = vpow.pop %v1022
      %v1024 = vmul.f32 %v970, 1.442695
      %v1025 = vpow.pop %v1024
      %v1026 = vmul.f32 %v971, 1.442695
      %v1027 = vpow.pop %v1026
      %v1028 = vmul.f32 %v972, 1.442695
      %v1029 = vpow.pop %v1028
      %v1030 = vmul.f32 %v973, 1.442695
      %v1031 = vpow.pop %v1030
      %v1032 = vmul.f32 %v974, 1.442695
      %v1033 = vpow.pop %v1032
      %v1034 = vmul.f32 %v975, 1.442695
      %v1035 = vpow.pop %v1034
      %v1036 = vmul.f32 %v976, 1.442695
      %v1037 = vpow.pop %v1036
      %v1038 = vmul.f32 %v977, 1.442695
      %v1039 = vpow.pop %v1038
      %v1040 = vmul.f32 %v978, 1.442695
      %v1041 = vpow.pop %v1040
      %v1042 = vmul.f32 %v979, 1.442695
      %v1043 = vpow.pop %v1042
      %v1044 = vadd.f32 %v981, 1.0
      %v1045 = vadd.f32 %v983, 1.0
      %v1046 = vadd.f32 %v985, 1.0
      %v1047 = vadd.f32 %v987, 1.0
      %v1048 = vadd.f32 %v989, 1.0
      %v1049 = vadd.f32 %v991, 1.0
      %v1050 = vadd.f32 %v993, 1.0
      %v1051 = vadd.f32 %v995, 1.0
      %v1052 = vadd.f32 %v997, 1.0
      %v1053 = vadd.f32 %v999, 1.0
      %v1054 = vadd.f32 %v1001, 1.0
      %v1055 = vadd.f32 %v1003, 1.0
      %v1056 = vadd.f32 %v1005, 1.0
      %v1057 = vadd.f32 %v1007, 1.0
      %v1058 = vadd.f32 %v1009, 1.0
      %v1059 = vadd.f32 %v1011, 1.0
      %v1060 = vadd.f32 %v1013, 1.0
      %v1061 = vadd.f32 %v1015, 1.0
      %v1062 = vadd.f32 %v1017, 1.0
      %v1063 = vadd.f32 %v1019, 1.0
      %v1064 = vadd.f32 %v1021, 1.0
      %v1065 = vadd.f32 %v1023, 1.0
      %v1066 = vadd.f32 %v1025, 1.0
      %v1067 = vadd.f32 %v1027, 1.0
      %v1068 = vadd.f32 %v1029, 1.0
      %v1069 = vadd.f32 %v1031, 1.0
      %v1070 = vadd.f32 %v1033, 1.0
      %v1071 = vadd.f32 %v1035, 1.0
      %v1072 = vadd.f32 %v1037, 1.0
      %v1073 = vadd.f32 %v1039, 1.0
      %v1074 = vadd.f32 %v1041, 1.0
      %v1075 = vadd.f32 %v1043, 1.0
      %v1076 = vrcp.pop %v1044
      %v1077 = vrcp.pop %v1045
      %v1078 = vrcp.pop %v1046
      %v1079 = vrcp.pop %v1047
      %v1080 = vrcp.pop %v1048
      %v1081 = vrcp.pop %v1049
      %v1082 = vrcp.pop %v1050
      %v1083 = vrcp.pop %v1051
      %v1084 = vrcp.pop %v1052
      %v1085 = vrcp.pop %v1053
      %v1086 = vrcp.pop %v1054
      %v1087 = vrcp.pop %v1055
      %v1088 = vrcp.pop %v1056
      %v1089 = vrcp.pop %v1057
      %v1090 = vrcp.pop %v1058
      %v1091 = vrcp.pop %v1059
      %v1092 = vrcp.pop %v1060
      %v1093 = vrcp.pop %v1061
      %v1094 = vrcp.pop %v1062
      %v1095 = vrcp.pop %v1063
      %v1096 = vrcp.pop %v1064
      %v1097 = vrcp.pop %v1065
      %v1098 = vrcp.pop %v1066
      %v1099 = vrcp.pop %v1067
      %v1100 = vrcp.pop %v1068
      %v1101 = vrcp.pop %v1069
      %v1102 = vrcp.pop %v1070
      %v1103 = vrcp.pop %v1071
      %v1104 = vrcp.pop %v1072
      %v1105 = vrcp.pop %v1073
      %v1106 = vrcp.pop %v1074
      %v1107 = vrcp.pop %v1075
      %v1108 = vmul.f32 %v916, %v1076
      %v1109 = vmul.f32 %v917, %v1077
      %v1110 = vmul.f32 %v918, %v1078
      %v1111 = vmul.f32 %v919, %v1079
      %v1112 = vmul.f32 %v920, %v1080
      %v1113 = vmul.f32 %v921, %v1081
      %v1114 = vmul.f32 %v922, %v1082
      %v1115 = vmul.f32 %v923, %v1083
      %v1116 = vmul.f32 %v924, %v1084
      %v1117 = vmul.f32 %v925, %v1085
      %v1118 = vmul.f32 %v926, %v1086
      %v1119 = vmul.f32 %v927, %v1087
      %v1120 = vmul.f32 %v928, %v1088
      %v1121 = vmul.f32 %v929, %v1089
      %v1122 = vmul.f32 %v930, %v1090
      %v1123 = vmul.f32 %v931, %v1091
      %v1124 = vmul.f32 %v932, %v1092
      %v1125 = vmul.f32 %v933, %v1093
      %v1126 = vmul.f32 %v934, %v1094
      %v1127 = vmul.f32 %v935, %v1095
      %v1128 = vmul.f32 %v936, %v1096
      %v1129 = vmul.f32 %v937, %v1097
      %v1130 = vmul.f32 %v938, %v1098
      %v1131 = vmul.f32 %v939, %v1099
      %v1132 = vmul.f32 %v940, %v1100
      %v1133 = vmul.f32 %v941, %v1101
      %v1134 = vmul.f32 %v942, %v1102
      %v1135 = vmul.f32 %v943, %v1103
      %v1136 = vmul.f32 %v944, %v1104
      %v1137 = vmul.f32 %v945, %v1105
      %v1138 = vmul.f32 %v946, %v1106
      %v1139 = vmul.f32 %v947, %v1107
      %vm1140 = vcmask 64512
      %1141 = vst.msk [vmem:[%s194] sm:$0xff] %vm1140, %v1108
      %1142 = vst.msk [vmem:[%s194 + $0x8] sm:$0xff] %vm1140, %v1109
      %1143 = vst.msk [vmem:[%s194 + $0x10] sm:$0xff] %vm1140, %v1110
      %1144 = vst.msk [vmem:[%s194 + $0x18] sm:$0xff] %vm1140, %v1111
      %1145 = vst.msk [vmem:[%s194 + $0x20] sm:$0xff] %vm1140, %v1112
      %1146 = vst.msk [vmem:[%s194 + $0x28] sm:$0xff] %vm1140, %v1113
      %1147 = vst.msk [vmem:[%s194 + $0x30] sm:$0xff] %vm1140, %v1114
      %1148 = vst.msk [vmem:[%s194 + $0x38] sm:$0xff] %vm1140, %v1115
      %1149 = vst.msk [vmem:[%s194 + $0x40] sm:$0xff] %vm1140, %v1116
      %1150 = vst.msk [vmem:[%s194 + $0x48] sm:$0xff] %vm1140, %v1117
      %1151 = vst.msk [vmem:[%s194 + $0x50] sm:$0xff] %vm1140, %v1118
      %1152 = vst.msk [vmem:[%s194 + $0x58] sm:$0xff] %vm1140, %v1119
      %1153 = vst.msk [vmem:[%s194 + $0x60] sm:$0xff] %vm1140, %v1120
      %1154 = vst.msk [vmem:[%s194 + $0x68] sm:$0xff] %vm1140, %v1121
      %1155 = vst.msk [vmem:[%s194 + $0x70] sm:$0xff] %vm1140, %v1122
      %1156 = vst.msk [vmem:[%s194 + $0x78] sm:$0xff] %vm1140, %v1123
      %1157 = vst.msk [vmem:[%s194 + $0x80] sm:$0xff] %vm1140, %v1124
      %1158 = vst.msk [vmem:[%s194 + $0x88] sm:$0xff] %vm1140, %v1125
      %1159 = vst.msk [vmem:[%s194 + $0x90] sm:$0xff] %vm1140, %v1126
      %1160 = vst.msk [vmem:[%s194 + $0x98] sm:$0xff] %vm1140, %v1127
      %1161 = vst.msk [vmem:[%s194 + $0xa0] sm:$0xff] %vm1140, %v1128
      %1162 = vst.msk [vmem:[%s194 + $0xa8] sm:$0xff] %vm1140, %v1129
      %1163 = vst.msk [vmem:[%s194 + $0xb0] sm:$0xff] %vm1140, %v1130
      %1164 = vst.msk [vmem:[%s194 + $0xb8] sm:$0xff] %vm1140, %v1131
      %1165 = vst.msk [vmem:[%s194 + $0xc0] sm:$0xff] %vm1140, %v1132
      %1166 = vst.msk [vmem:[%s194 + $0xc8] sm:$0xff] %vm1140, %v1133
      %1167 = vst.msk [vmem:[%s194 + $0xd0] sm:$0xff] %vm1140, %v1134
      %1168 = vst.msk [vmem:[%s194 + $0xd8] sm:$0xff] %vm1140, %v1135
      %1169 = vst.msk [vmem:[%s194 + $0xe0] sm:$0xff] %vm1140, %v1136
      %1170 = vst.msk [vmem:[%s194 + $0xe8] sm:$0xff] %vm1140, %v1137
      %1171 = vst.msk [vmem:[%s194 + $0xf0] sm:$0xff] %vm1140, %v1138
      %1172 = vst.msk [vmem:[%s194 + $0xf8] sm:$0xff] %vm1140, %v1139
      %s1173 = smul.u32 16, %s19
      %p1174 = scmp.lt.s32.totalorder %s18, 1
      %s1175 = scalar_select %p1174, %s18, 1
      %p1176 = scmp.lt.s32.totalorder %s1173, 15
      %s1177 = scalar_select %p1176, %s1173, 15
      %s1178 = smul.addr %s1177, 2
      %s1179 = smul.addr %s1175, 32
      %s1180 = sadd.s32 %s1178, %s1179
      %s1181 = smul.addr %s1180, 8
      %s1182 = scalar_lea.vmem %s3, %s1181
      // Predicated region
      $region33: #{tpu_custom_call.1} parent=31 // pred_check
        %p1183 = pneg %p114
      $region34: #{tpu_custom_call.1} parent=31 // pred_check_branch
        %1185 = sbr.rel (%p1183) target = $region36
      $region35: #{tpu_custom_call.1} parent=31 // pred_region
        %s1186 = smul.u32 16, %s19
      $region36: #{tpu_custom_call.1} parent=31 // pred_fallthru
        _
    $region32: #{tpu_custom_call.1} parent=5 // pred_fallthru
      _
    %p1187 = scmp.le.s32.totalorder 2, %s9
    // Predicated region
    $region37: #{tpu_custom_call.1} parent=5 // pred_check
      %p1188 = pneg %p1187
    $region38: #{tpu_custom_call.1} parent=5 // pred_check_branch
      %1190 = sbr.rel (%p1188) target = $region40
    $region39: #{tpu_custom_call.1} parent=5 // pred_region
      %s1191 = ssub.s32 %s9, 2
      // Predicated region
      $region41: #{tpu_custom_call.1} parent=39 // pred_check
        %p1192 = pneg %p120
      $region42: #{tpu_custom_call.1} parent=39 // pred_check_branch
        %1194 = sbr.rel (%p1192) target = $region44
      $region43: #{tpu_custom_call.1} parent=39 // pred_region
        %s1195 = smul.u32 16, %s21
        %p1196 = scmp.lt.s32.totalorder %s20, 1
        %s1197 = scalar_select %p1196, %s20, 1
        %p1198 = scmp.lt.s32.totalorder %s1195, 15
        %s1199 = scalar_select %p1198, %s1195, 15
        %s1200 = smul.addr %s1199, 2
        %s1201 = smul.addr %s1197, 32
        %s1202 = sadd.s32 %s1200, %s1201
        %s1203 = smul.addr %s1202, 8
        %s1204 = scalar_lea.vmem %s3, %s1203
      $region44: #{tpu_custom_call.1} parent=39 // pred_fallthru
        _
    $region40: #{tpu_custom_call.1} parent=5 // pred_fallthru
      _
  $region6: #{tpu_custom_call.1} parent=0 // loop_footer
    %s13 = sadd.s32 1, %s9
  $region7: #{tpu_custom_call.1} parent=0 // loop_footer_branch
    %8 = sbr.rel target = $region3
  $region8: #{tpu_custom_call.1} parent=0 // loop_exit
    _

</llo_original>
